<compile_context>
chip_gen: v7x
topology: tpu7x:2x2x1
jax: 0.10.0
libtpu: 0.0.40
codegen_flags: <defaults>
</compile_context>

<pallas_src>
import functools

import jax
import jax.numpy as jnp
from jax import lax
from jax.experimental import pallas as pl
from jax.experimental.pallas import tpu as pltpu


def _round_up(x: int, m: int) -> int:
    return ((x + m - 1) // m) * m


def _has_bf16_eup() -> bool:
    """True on chips whose EUP has a bf16 path (v6e / v7x); False on v5e and older."""
    try:
        kind = jax.devices()[0].device_kind.lower()
    except Exception:
        return False
    return any(tag in kind for tag in ("v6", "v7", "7x"))


def _vmem_limit_bytes() -> int:
    """Scoped-VMEM limit derived from the chip's physical VMEM capacity."""
    try:
        phys = int(pltpu.get_tpu_info().vmem_capacity_bytes)
    except Exception:
        phys = 64 * 1024 * 1024
    # v5e/v6e: 128 MiB physical -> 64 MiB scoped limit; v7x: 64 MiB -> 32 MiB.
    return (64 if phys >= 100 * 1024 * 1024 else 32) * 1024 * 1024


def _ce_kernel(x_ref, out_ref, m_ref, l_ref,
               *, n_rows: int, n_vocab: int, tn: int, tv: int,
               mask_rows: bool, mask_vocab: bool, exp_dtype):
    i = pl.program_id(0)            # row block (parallel)
    j = pl.program_id(1)            # vocab block (reduction, arbitrary, last)
    nj = pl.num_programs(1)

    @pl.when(j == 0)
    def _init():
        m_ref[...] = jnp.full(m_ref.shape, jnp.finfo(jnp.float32).min, jnp.float32)
        l_ref[...] = jnp.zeros(l_ref.shape, jnp.float32)

    x = x_ref[...]                  # (tn, tv), native dtype (f32 or bf16)

    def _update(xb):
        # Online (flash-style) logsumexp step over one vocab tile.
        m_prev = m_ref[...]                                             # (tn, 1)
        m_blk = jnp.max(xb, axis=-1, keepdims=True).astype(jnp.float32)
        m_new = jnp.maximum(m_prev, m_blk)
        d = xb.astype(jnp.float32) - m_new                              # (tn, tv)
        p = jnp.exp(d.astype(exp_dtype))       # bf16 exp on v6e/v7x when enabled
        l_ref[...] = jnp.exp(m_prev - m_new) * l_ref[...] + jnp.sum(
            p, axis=-1, keepdims=True, dtype=jnp.float32)
        m_ref[...] = m_new

    if mask_vocab:
        # V % tv != 0: only the (single) partial last vocab block needs the
        # out-of-range-lane mask; all full blocks run the unmasked body.
        @pl.when(j < nj - 1)
        def _full():
            _update(x)

        @pl.when(j == nj - 1)
        def _partial():
            vid = j * tv + lax.broadcasted_iota(jnp.int32, (1, tv), 1)
            neg = jnp.asarray(jnp.finfo(x.dtype).min, x.dtype)
            _update(jnp.where(vid < n_vocab, x, neg))
    else:
        _update(x)

    # Finalize this row block: partial sum of per-row logsumexp.
    @pl.when(j == nj - 1)
    def _finalize():
        row_lse = m_ref[...] + jnp.log(l_ref[...])                      # (tn, 1)
        if mask_rows:
            row_ids = i * tn + lax.broadcasted_iota(jnp.int32, row_lse.shape, 0)
            row_lse = jnp.where(row_ids < n_rows, row_lse, jnp.float32(0.0))
        out_ref[...] = jnp.sum(row_lse).reshape(1, 1, 1)


def cross_entropy_loss(x: jax.Array, targets: jax.Array,
                       *, tn: int | None = None, tv: int | None = None,
                       exp_dtype=None) -> jax.Array:
    """Pallas TPU cross-entropy loss. x: (N, V) float logits, targets: (N,) ints."""
    N, V = x.shape
    itemsize = jnp.dtype(x.dtype).itemsize
    row_align = 8 if itemsize >= 4 else 16          # f32 -> 8, bf16 -> 16

    vmem_limit = _vmem_limit_bytes()

    # --- vocab tile: whole vocab when small; otherwise prefer a lane-aligned
    # tile that divides V (so no block ever needs masking). ---------------------
    if tv is None:
        tv_max = 8192
        if V <= tv_max:
            tv = V                                   # full-dim block
        else:
            tv = tv_max
            for cand in range(tv_max, 127, -128):
                if V % cand == 0:
                    tv = cand
                    break

    # --- row tile: biggest block such that 2x double-buffered native tile plus
    # ~2 f32 temporaries stay within ~3/4 of the scoped-VMEM limit. ------------
    if tn is None:
        bytes_per_elem = 2 * itemsize + 8            # 2x native + 2x f32 temps
        elems_cap = (3 * vmem_limit) // (4 * bytes_per_elem)
        tn_cap = max(row_align, min(4096, (elems_cap // tv) // row_align * row_align))
        tn = min(tn_cap, _round_up(N, row_align))
        # Megacore: keep >= 2 row blocks when N allows it (v7x has 2 TCs).
        if pl.cdiv(N, tn) < 2:
            tn_half = max(row_align, _round_up(pl.cdiv(N, 2), row_align))
            if pl.cdiv(N, tn_half) >= 2:
                tn = min(tn, tn_half)

    g_rows = pl.cdiv(N, tn)
    g_vocab = pl.cdiv(V, tv)
    mask_rows = (N % tn) != 0
    mask_vocab = (V % tv) != 0

    if exp_dtype is None:
        exp_dtype = (jnp.bfloat16
                     if (x.dtype == jnp.bfloat16 and _has_bf16_eup())
                     else jnp.float32)
    exp_dtype = jnp.dtype(exp_dtype)

    kernel = functools.partial(
        _ce_kernel, n_rows=N, n_vocab=V, tn=tn, tv=tv,
        mask_rows=mask_rows, mask_vocab=mask_vocab, exp_dtype=exp_dtype)

    lse_partials = pl.pallas_call(
        kernel,
        out_shape=jax.ShapeDtypeStruct((g_rows, 1, 1), jnp.float32),
        grid_spec=pltpu.PrefetchScalarGridSpec(
            num_scalar_prefetch=0,
            grid=(g_rows, g_vocab),
            in_specs=[pl.BlockSpec((tn, tv), lambda i, j: (i, j))],   # logits tile
            out_specs=pl.BlockSpec((1, 1, 1), lambda i, j: (i, 0, 0)),
            scratch_shapes=[
                pltpu.VMEM((tn, 1), jnp.float32),   # running max m
                pltpu.VMEM((tn, 1), jnp.float32),   # running sum l
            ],
        ),
        compiler_params=pltpu.CompilerParams(
            dimension_semantics=("parallel", "arbitrary"),
            vmem_limit_bytes=vmem_limit,
        ),
    )(x)

    # Target-logit gather + final reduction/mean in the wrapper (touches only N
    # elements of HBM; removes all int-compare/select work from the kernel).
    tgt_logits = jnp.take_along_axis(
        x, targets.reshape(N, 1).astype(jnp.int32), axis=1).astype(jnp.float32)
    return (jnp.sum(lse_partials) - jnp.sum(tgt_logits)) / jnp.float32(N)


def _reference_loss(x, targets):
    lse = jax.scipy.special.logsumexp(x.astype(jnp.float32), axis=-1)
    tgt = x.astype(jnp.float32)[jnp.arange(x.shape[0]), targets]
    return jnp.mean(lse - tgt)


if __name__ == "__main__":
    key = jax.random.PRNGKey(0)
    k1, k2, k3, k4, k5, k6 = jax.random.split(key, 6)

    # Case 1: f32, lane-dense vocab, fully automatic tiling (row axis is
    # auto-split into >= 2 parallel blocks for megacore).
    N1, V1 = 16, 128
    x1 = jax.random.normal(k1, (N1, V1), dtype=jnp.float32)
    t1 = jax.random.randint(k2, (N1,), 0, V1, dtype=jnp.int32)
    loss1 = jax.block_until_ready(cross_entropy_loss(x1, t1))
    ref1 = _reference_loss(x1, t1)
    assert jnp.allclose(loss1, ref1, atol=1e-5, rtol=1e-5), (loss1, ref1)

    # Case 2: bf16 logits, ragged rows (tail-row mask) + ragged vocab tiling
    # (online logsumexp over 2 vocab blocks with a partial last block).
    # Tolerance covers the bf16-exp path taken on chips with a bf16 EUP.
    N2, V2 = 24, 160
    x2 = jax.random.normal(k3, (N2, V2), dtype=jnp.float32).astype(jnp.bfloat16)
    t2 = jax.random.randint(k4, (N2,), 0, V2, dtype=jnp.int32)
    loss2 = jax.block_until_ready(cross_entropy_loss(x2, t2, tn=16, tv=128))
    ref2 = _reference_loss(x2, t2)
    assert jnp.allclose(loss2, ref2, atol=2e-2, rtol=2e-2), (loss2, ref2)

    # Case 3: f32, multi-vocab-block path with tv | V (no masking on any block).
    N3, V3 = 32, 512
    x3 = jax.random.normal(k5, (N3, V3), dtype=jnp.float32)
    t3 = jax.random.randint(k6, (N3,), 0, V3, dtype=jnp.int32)
    loss3 = jax.block_until_ready(cross_entropy_loss(x3, t3, tv=256))
    ref3 = _reference_loss(x3, t3)
    assert jnp.allclose(loss3, ref3, atol=1e-5, rtol=1e-5), (loss3, ref3)

    # TODO(synk): the reference module's `Softmax` member is unused in forward();
    # no ignore_index / class weights / label smoothing in the spec either.
    print("KERNEL_OK")
</pallas_src>

<mosaic_0001>
module attributes {stable_mosaic.version = 11 : i64} {
  func.func @_ce_kernel(%arg0: i32, %arg1: i32, %arg2: memref<8x128xf32, #tpu.memory_space<vmem>>, %arg3: memref<1x1x1xf32, #tpu.memory_space<vmem>>, %arg4: memref<8x1xf32, #tpu.memory_space<vmem>>, %arg5: memref<8x1xf32, #tpu.memory_space<vmem>>) attributes {dimension_semantics = [#tpu.dimension_semantics<parallel>, #tpu.dimension_semantics<arbitrary>], iteration_bounds = array<i64: 2, 1>, scalar_prefetch = 0 : i64, scratch_operands = 2 : i64, tpu.core_type = #tpu.core_type<tc>, window_params = [{transform_indices = @transform_0, window_bounds = array<i64: 8, 128>}, {transform_indices = @transform_1, window_bounds = array<i64: 1, 1, 1>}]} {
    %c0_i32 = arith.constant 0 : i32
    %0 = arith.cmpi eq, %arg1, %c0_i32 : i32
    %1 = arith.extui %0 : i1 to i32
    %c0_i32_0 = arith.constant 0 : i32
    %2 = arith.cmpi ne, %1, %c0_i32_0 : i32
    scf.if %2 {
      %cst_13 = arith.constant -3.40282347E+38 : f32
      %23 = vector.broadcast %cst_13 : f32 to vector<8x1xf32>
      %c0_14 = arith.constant 0 : index
      %c0_15 = arith.constant 0 : index
      %24 = vector.load %arg4[%c0_14, %c0_15] : memref<8x1xf32, #tpu.memory_space<vmem>>, vector<8x1xf32>
      tpu.vector_store %arg4[%c0_14, %c0_15], %23 {strides = array<i32>} : memref<8x1xf32, #tpu.memory_space<vmem>>, vector<8x1xf32>,
      %cst_16 = arith.constant 0.000000e+00 : f32
      %25 = vector.broadcast %cst_16 : f32 to vector<8x1xf32>
      %c0_17 = arith.constant 0 : index
      %c0_18 = arith.constant 0 : index
      %26 = vector.load %arg5[%c0_17, %c0_18] : memref<8x1xf32, #tpu.memory_space<vmem>>, vector<8x1xf32>
      tpu.vector_store %arg5[%c0_17, %c0_18], %25 {strides = array<i32>} : memref<8x1xf32, #tpu.memory_space<vmem>>, vector<8x1xf32>,
    } else {
    }
    %c0 = arith.constant 0 : index
    %c0_1 = arith.constant 0 : index
    %3 = vector.load %arg2[%c0, %c0_1] : memref<8x128xf32, #tpu.memory_space<vmem>>, vector<8x128xf32>
    %c0_2 = arith.constant 0 : index
    %c0_3 = arith.constant 0 : index
    %4 = vector.load %arg4[%c0_2, %c0_3] : memref<8x1xf32, #tpu.memory_space<vmem>>, vector<8x1xf32>
    %cst = arith.constant dense<0xFF800000> : vector<8xf32>
    %5 = vector.multi_reduction <maximumf>, %3, %cst [1] : vector<8x128xf32> to vector<8xf32>
    %6 = vector.shape_cast %5 : vector<8xf32> to vector<8x1xf32>
    %7 = arith.maximumf %4, %6 : vector<8x1xf32>
    %8 = vector.broadcast %7 : vector<8x1xf32> to vector<8x128xf32>
    %9 = arith.subf %3, %8 : vector<8x128xf32>
    %10 = math.exp %9 : vector<8x128xf32>
    %11 = arith.subf %4, %7 : vector<8x1xf32>
    %12 = math.exp %11 : vector<8x1xf32>
    %c0_4 = arith.constant 0 : index
    %c0_5 = arith.constant 0 : index
    %13 = vector.load %arg5[%c0_4, %c0_5] : memref<8x1xf32, #tpu.memory_space<vmem>>, vector<8x1xf32>
    %14 = arith.mulf %12, %13 : vector<8x1xf32>
    %cst_6 = arith.constant dense<0.000000e+00> : vector<8xf32>
    %15 = vector.multi_reduction <add>, %10, %cst_6 [1] : vector<8x128xf32> to vector<8xf32>
    %16 = vector.shape_cast %15 : vector<8xf32> to vector<8x1xf32>
    %17 = arith.addf %14, %16 : vector<8x1xf32>
    %c0_7 = arith.constant 0 : index
    %c0_8 = arith.constant 0 : index
    %18 = vector.load %arg5[%c0_7, %c0_8] : memref<8x1xf32, #tpu.memory_space<vmem>>, vector<8x1xf32>
    tpu.vector_store %arg5[%c0_7, %c0_8], %17 {strides = array<i32>} : memref<8x1xf32, #tpu.memory_space<vmem>>, vector<8x1xf32>,
    %c0_9 = arith.constant 0 : index
    %c0_10 = arith.constant 0 : index
    %19 = vector.load %arg4[%c0_9, %c0_10] : memref<8x1xf32, #tpu.memory_space<vmem>>, vector<8x1xf32>
    tpu.vector_store %arg4[%c0_9, %c0_10], %7 {strides = array<i32>} : memref<8x1xf32, #tpu.memory_space<vmem>>, vector<8x1xf32>,
    %c0_i32_11 = arith.constant 0 : i32
    %20 = arith.cmpi eq, %arg1, %c0_i32_11 : i32
    %21 = arith.extui %20 : i1 to i32
    %c0_i32_12 = arith.constant 0 : i32
    %22 = arith.cmpi ne, %21, %c0_i32_12 : i32
    scf.if %22 {
      %c0_13 = arith.constant 0 : index
      %c0_14 = arith.constant 0 : index
      %23 = vector.load %arg4[%c0_13, %c0_14] : memref<8x1xf32, #tpu.memory_space<vmem>>, vector<8x1xf32>
      %c0_15 = arith.constant 0 : index
      %c0_16 = arith.constant 0 : index
      %24 = vector.load %arg5[%c0_15, %c0_16] : memref<8x1xf32, #tpu.memory_space<vmem>>, vector<8x1xf32>
      %25 = math.log %24 : vector<8x1xf32>
      %26 = arith.addf %23, %25 : vector<8x1xf32>
      %27 = vector.shape_cast %26 : vector<8x1xf32> to vector<1x8x1xf32>
      %cst_17 = arith.constant dense<0.000000e+00> : vector<1xf32>
      %28 = vector.multi_reduction <add>, %27, %cst_17 [1, 2] : vector<1x8x1xf32> to vector<1xf32>
      %29 = vector.shape_cast %28 : vector<1xf32> to vector<1x1x1xf32>
      %30 = vector.extract %29[0, 0, 0] : f32 from vector<1x1x1xf32>
      %31 = vector.broadcast %30 : f32 to vector<1x1x1xf32>
      %c0_18 = arith.constant 0 : index
      %c0_19 = arith.constant 0 : index
      %c0_20 = arith.constant 0 : index
      %32 = vector.load %arg3[%c0_18, %c0_19, %c0_20] : memref<1x1x1xf32, #tpu.memory_space<vmem>>, vector<1x1x1xf32>
      tpu.vector_store %arg3[%c0_18, %c0_19, %c0_20], %31 {strides = array<i32>} : memref<1x1x1xf32, #tpu.memory_space<vmem>>, vector<1x1x1xf32>,
    } else {
    }
    return
  }
  func.func @transform_0(%arg0: i32, %arg1: i32) -> (i32, i32) {
    %c0_i32 = arith.constant 0 : i32
    return %arg0, %arg1 : i32, i32
  }
  func.func @transform_1(%arg0: i32, %arg1: i32) -> (i32, i32, i32) {
    %c0_i32 = arith.constant 0 : i32
    %c0_i32_0 = arith.constant 0 : i32
    %c0_i32_1 = arith.constant 0 : i32
    return %arg0, %c0_i32, %c0_i32_0 : i32, i32, i32
  }
}

</mosaic_0001>

<llo_original>
// kernel: tpu_custom_call.1
$region0: #{tpu_custom_call.1}
  #allocation0 [shape = 'u32[]', space=smem, size = 0x4, offset = 0x4, fixed_abs, tag = 'smem constant byte address 0x4 - core index']
  #allocation1 [shape = 'u32[144,128]{1,0:T(1,128)}', space=vmem, size = 0x12000, scoped, tag = 'internal scratch']
  #allocation2 [shape = 'f32[8,1]{1,0:T(8,128)}', space=vmem, size = 0x1000, scoped, tag = 'scratch operand']
  #allocation3 [shape = 'f32[8,1]{1,0:T(8,128)}', space=vmem, size = 0x1000, scoped, tag = 'scratch operand']
  %s0 = inlined_call_operand.hbm [shape: f32[16,128], index: 0, kind: input, shape index: {}]
  %s1 = inlined_call_operand.vmem [shape: f32[2,1,1], index: 1, kind: output, shape index: {}]
  %s2 = sld [smem:[#allocation0]]
  $region49: #{tpu_custom_call.1} parent=0
    _
  %s4 = ssub.s32 1, %s2
  %s5 = scalar_select 0, %s4, %s2
  $region1: #{tpu_custom_call.1} parent=0
    #allocation4 [shape = 'u8[8192]{0}', space=vmem, size = 0x2000, scoped, tag = 'input window, operand 0']
    #allocation5 [shape = 's32[2]{0}', space=sflag, size = 0x8, scoped, tag = 'scoped memory for tpu_custom_call.1']
    %6 = vsyncpa [#allocation5], 0
    %s7 = scalar_lea.sflag [#allocation5], 1
    %8 = vsyncpa %s7, 0
    loop: start=0, step=1, limit=4
    $region2: #{tpu_custom_call.1} parent=1 // loop_pre_header
      _
    $region3: #{tpu_custom_call.1} parent=1 // loop_header
      %s10 = sphi 0, %s14
      %p11 = scmp.ge.s32.totalorder %s10, 4
      %s17 = sphi 0, %s29
      %s18 = sphi 0, %s25
      %s19 = sphi 0, %s17
      %s20 = sphi 0, %s18
      %s21 = sphi 0, %s19
      %s22 = sphi 0, %s20
      %s34 = sphi 0, %s36
      %s37 = sphi 0, %s34
      %s38 = sphi 0, %s37
      %s54 = sphi 0, %s38
      %s60 = sphi 0, %s62
      %s63 = sphi 0, %s60
      %s64 = sphi 0, %s63
      %s80 = sphi 0, %s64
    $region4: #{tpu_custom_call.1} parent=1 // loop_header_branch
      %13 = sbr.rel (%p11) target = $region8
    $region5: #{tpu_custom_call.1} parent=1 // loop_body
      %s15 = ssub.s32 %s10, 1
      %s16 = ssub.s32 %s10, 2
      %s23 = sadd.s32 1, %s18
      %p24 = scmp.ge.s32.totalorder %s23, 1
      %s25 = scalar_select %p24, 0, %s23
      %s26 = sadd.s32 1, %s17
      %s27 = scalar_select %p24, %s26, %s17
      %p28 = scmp.ge.s32.totalorder %s27, 2
      %s29 = scalar_select %p28, 0, %s27
      %s30 = ssub.s32 %s17, %s29
      %s31 = ssub.s32 %s18, %s25
      %s32 = sor.u32 %s30, %s31
      %p33 = scmp.eq.s32.totalorder %s32, 0
      %s35 = sadd.s32 %s34, 1
      %s36 = scalar_select %p33, %s34, %s35
      %p39 = pneg %p33
      %p40 = scmp.eq.s32.totalorder %s10, 1
      %p41 = por %p39, %p40
      %p42 = scmp.ne.s32.totalorder %s34, %s37
      %p43 = scmp.eq.s32.totalorder %s10, 0
      %p44 = por %p42, %p43
      %p45 = scmp.ne.s32.totalorder %s34, %s37
      %p46 = scmp.eq.s32.totalorder %s15, 1
      %p47 = por %p45, %p46
      %p48 = scmp.ne.s32.totalorder %s37, %s38
      %p49 = scmp.eq.s32.totalorder %s15, 0
      %p50 = por %p48, %p49
      %p51 = scmp.ne.s32.totalorder %s37, %s38
      %p52 = scmp.eq.s32.totalorder %s16, 1
      %p53 = por %p51, %p52
      %p55 = scmp.ne.s32.totalorder %s38, %s54
      %p56 = scmp.eq.s32.totalorder %s16, 0
      %p57 = por %p55, %p56
      %s58 = ssub.s32 %s17, %s29
      %p59 = scmp.eq.s32.totalorder %s58, 0
      %s61 = sadd.s32 %s60, 1
      %s62 = scalar_select %p59, %s60, %s61
      %p65 = pneg %p59
      %p66 = scmp.eq.s32.totalorder %s10, 1
      %p67 = por %p65, %p66
      %p68 = scmp.ne.s32.totalorder %s60, %s63
      %p69 = scmp.eq.s32.totalorder %s10, 0
      %p70 = por %p68, %p69
      %p71 = scmp.ne.s32.totalorder %s60, %s63
      %p72 = scmp.eq.s32.totalorder %s15, 1
      %p73 = por %p71, %p72
      %p74 = scmp.ne.s32.totalorder %s63, %s64
      %p75 = scmp.eq.s32.totalorder %s15, 0
      %p76 = por %p74, %p75
      %p77 = scmp.ne.s32.totalorder %s63, %s64
      %p78 = scmp.eq.s32.totalorder %s16, 1
      %p79 = por %p77, %p78
      %p81 = scmp.ne.s32.totalorder %s64, %s80
      %p82 = scmp.eq.s32.totalorder %s16, 0
      %p83 = por %p81, %p82
      %p84 = scmp.le.s32.totalorder 1, %s10
      %p85 = scmp.lt.s32.totalorder %s10, 3
      %p86 = pnand %p84, %p85
      %p87 = pneg %p86
      // Predicated region
      $region9: #{tpu_custom_call.1} parent=5 // pred_check
        _
      $region10: #{tpu_custom_call.1} parent=5 // pred_check_branch
        %89 = sbr.rel (%p86) target = $region12
      $region11: #{tpu_custom_call.1} parent=5 // pred_region
        %s90 = ssub.s32 %s10, 1
      $region12: #{tpu_custom_call.1} parent=5 // pred_fallthru
        _
      %p91 = scmp.lt.s32.totalorder %s10, 2
      // Predicated region
      $region13: #{tpu_custom_call.1} parent=5 // pred_check
        %p92 = pneg %p91
      $region14: #{tpu_custom_call.1} parent=5 // pred_check_branch
        %94 = sbr.rel (%p92) target = $region16
      $region15: #{tpu_custom_call.1} parent=5 // pred_region
        // Predicated region
        $region17: #{tpu_custom_call.1} parent=15 // pred_check
          %p95 = pneg %p44
        $region18: #{tpu_custom_call.1} parent=15 // pred_check_branch
          %97 = sbr.rel (%p95) target = $region20
        $region19: #{tpu_custom_call.1} parent=15 // pred_region
          %s98 = sand.u32 %s34, 1
          %s99 = scalar_lea.sflag [#allocation5], %s98
          %s100 = sand.u32 %s34, 1
          %s101 = smul.addr %s100, 8
          %s102 = scalar_lea.vmem [#allocation4], %s101
          %s104 = ssub.s32 128, 128
          %105 = vsyncadd %s99, %s104
          %s106 = sadd.s32 %s18, %s17
          %s107 = smul.addr %s106, 128
          %s108 = scalar_lea.hbm %s0, %s107
          %s110 = sshll.u32 %s102, 4
          %s111 = int_to_ptr.vmem [resolvable:$true] %s110
          %113 = dma.hbm_to_vmem [thread:$0]  %s108, 128, %s111, %s99
        $region20: #{tpu_custom_call.1} parent=15 // pred_fallthru
          _
      $region16: #{tpu_custom_call.1} parent=5 // pred_fallthru
        _
      %p114 = scmp.le.s32.totalorder 1, %s10
      %p115 = scmp.lt.s32.totalorder %s10, 3
      %p116 = pnand %p114, %p115
      %p117 = pneg %p116
      // Predicated region
      $region21: #{tpu_custom_call.1} parent=5 // pred_check
        _
      $region22: #{tpu_custom_call.1} parent=5 // pred_check_branch
        %119 = sbr.rel (%p116) target = $region24
      $region23: #{tpu_custom_call.1} parent=5 // pred_region
        %s120 = ssub.s32 %s10, 1
        %s121 = sand.u32 %s37, 1
        %s122 = scalar_lea.sflag [#allocation5], %s121
        %s123 = sand.u32 %s37, 1
        %s124 = smul.addr %s123, 8
        %s125 = scalar_lea.vmem [#allocation4], %s124
        // Predicated region
        $region25: #{tpu_custom_call.1} parent=23 // pred_check
          %p126 = pneg %p50
        $region26: #{tpu_custom_call.1} parent=23 // pred_check_branch
          %128 = sbr.rel (%p126) target = $region28
        $region27: #{tpu_custom_call.1} parent=23 // pred_region
          %129 = dma.done %s122, 128
        $region28: #{tpu_custom_call.1} parent=23 // pred_fallthru
          _
        %s130 = sand.u32 %s37, 1
        %s131 = scalar_lea.sflag [#allocation5], %s130
        %s132 = sand.u32 %s37, 1
        %s133 = smul.addr %s132, 8
        %s134 = scalar_lea.vmem [#allocation4], %s133
        %p135 = pneg %p50
        %p136 = pneg %p47
        %p137 = pneg %p76
        %p138 = pneg %p73
        %p139 = scmp.lt.s32.totalorder %s19, 1
        %s140 = scalar_select %p139, %s19, 1
        %s141 = scalar_lea.vmem %s1, %s140
        %p142 = scmp.lt.s32.totalorder %s19, 1
        %s143 = scalar_select %p142, %s19, 1
        %s144 = scalar_lea.vmem %s1, %s143
        %p145 = scmp.eq.s32.totalorder %s20, 0
        // Predicated region
        $region29: #{tpu_custom_call.1} parent=23 // pred_check
          %p146 = pneg %p145
        $region30: #{tpu_custom_call.1} parent=23 // pred_check_branch
          %148 = sbr.rel (%p146) target = $region32
        $region31: #{tpu_custom_call.1} parent=23 // pred_region
          %vm149 = vcmask 7168
          %150 = vst.msk [vmem:[#allocation2] sm:$0xff] %vm149, -3.4028235e+38
          %151 = vst.msk [vmem:[#allocation3] sm:$0xff] %vm149, 0.0
        $region32: #{tpu_custom_call.1} parent=23 // pred_fallthru
          _
        %v152 = vld [vmem:[%s125] sm:$0xff]
        %v153 = vld [vmem:[#allocation2] sm:$0xff]
        %154 = vmax.xlane.f32.xlu0 %v152
        %v155 = vpop.xlane.xlu0 %154
        %v156 = vmax.f32 %v153, %v155
        %158 = vset.pattern.permute.xlu0 0
        %159 = vperm.xlu0 %158, %v156
        %v160 = vpop.permute.xlu0 %159
        %v162 = vsub.f32 %v152, %v160
        %v163 = vmul.f32 %v162, 1.442695
        %v164 = vpow.pop %v163
        %v165 = vsub.f32 %v153, %v156
        %v166 = vmul.f32 %v165, 1.442695
        %v167 = vpow.pop %v166
        %v168 = vld [vmem:[#allocation3] sm:$0xff]
        %v169 = vmul.f32 %v167, %v168
        %170 = vadd.xlane.f32.xlu0 %v164
        %v171 = vpop.xlane.xlu0 %170
        %v172 = vadd.f32 %v169, %v171
        %vm173 = vcmask 7168
        %174 = vst.msk [vmem:[#allocation3] sm:$0xff] %vm173, %v172
        %175 = vst.msk [vmem:[#allocation2] sm:$0xff] %vm173, %v156
        // Predicated region
        $region33: #{tpu_custom_call.1} parent=23 // pred_check
          %p176 = pneg %p145
        $region34: #{tpu_custom_call.1} parent=23 // pred_check_branch
          %178 = sbr.rel (%p176) target = $region36
        $region35: #{tpu_custom_call.1} parent=23 // pred_region
          %v179 = vld [vmem:[#allocation2] sm:$0xff]
          %v180 = vld [vmem:[#allocation3] sm:$0xff]
          %v181 = vlog2.pop %v180
          %v182 = vmul.f32 %v181, 0.6931472
          %v183 = vadd.f32 %v179, %v182
          %v184 = vsel %vm173, %v183, 0.0
          %185 = vadd.xlane.f32.xlu0 %v184
          %v186 = vpop.xlane.xlu0 %185
          %v187 = vrot.slane %v186, 4
          %v188 = vadd.f32 %v186, %v187
          %v189 = vrot.slane %v188, 2
          %v190 = vadd.f32 %v188, %v189
          %v191 = vrot.slane %v190, 1
          %v192 = vadd.f32 %v190, %v191
          %s193 = vtos %v192
          %v194 = vstv %s193
          %vm195 = vcmask 0
          %196 = vst.msk [vmem:[%s144] sm:$0x1] %vm195, %v194
        $region36: #{tpu_custom_call.1} parent=23 // pred_fallthru
          _
        %p197 = scmp.lt.s32.totalorder %s19, 1
        %s198 = scalar_select %p197, %s19, 1
        %s199 = scalar_lea.vmem %s1, %s198
        // Predicated region
        $region37: #{tpu_custom_call.1} parent=23 // pred_check
          %p200 = pneg %p73
        $region38: #{tpu_custom_call.1} parent=23 // pred_check_branch
          %202 = sbr.rel (%p200) target = $region40
        $region39: #{tpu_custom_call.1} parent=23 // pred_region
          _
        $region40: #{tpu_custom_call.1} parent=23 // pred_fallthru
          _
      $region24: #{tpu_custom_call.1} parent=5 // pred_fallthru
        _
      %p203 = scmp.le.s32.totalorder 2, %s10
      // Predicated region
      $region41: #{tpu_custom_call.1} parent=5 // pred_check
        %p204 = pneg %p203
      $region42: #{tpu_custom_call.1} parent=5 // pred_check_branch
        %206 = sbr.rel (%p204) target = $region44
      $region43: #{tpu_custom_call.1} parent=5 // pred_region
        %s207 = ssub.s32 %s10, 2
        // Predicated region
        $region45: #{tpu_custom_call.1} parent=43 // pred_check
          %p208 = pneg %p79
        $region46: #{tpu_custom_call.1} parent=43 // pred_check_branch
          %210 = sbr.rel (%p208) target = $region48
        $region47: #{tpu_custom_call.1} parent=43 // pred_region
          %p211 = scmp.lt.s32.totalorder %s21, 1
          %s212 = scalar_select %p211, %s21, 1
          %s213 = scalar_lea.vmem %s1, %s212
        $region48: #{tpu_custom_call.1} parent=43 // pred_fallthru
          _
      $region44: #{tpu_custom_call.1} parent=5 // pred_fallthru
        _
    $region6: #{tpu_custom_call.1} parent=1 // loop_footer
      %s14 = sadd.s32 1, %s10
    $region7: #{tpu_custom_call.1} parent=1 // loop_footer_branch
      %9 = sbr.rel target = $region3
    $region8: #{tpu_custom_call.1} parent=1 // loop_exit
      _
    %214 = vsyncpa [#allocation5], 1
    %s215 = scalar_lea.sflag [#allocation5], 1
    %216 = vsyncpa %s215, 1

</llo_original>
